<compile_context>
chip_gen: v5e
topology: v5e:2x2
jax: 0.10.0
libtpu: 0.0.40
codegen_flags: <defaults>
</compile_context>

<pallas_src>
import jax
import jax.numpy as jnp
from jax.experimental import pallas as pl
from jax.experimental.pallas import tpu as pltpu


def _permute_kernel(x_ref, o_ref):
    # x_ref: (C, T) tile of batch-0 data  ->  o_ref: (T, C)
    o_ref[...] = x_ref[...].T


# Tiles >= 512 keep each per-channel strided-DMA run >= 2 KiB (f32); 4096 is
# the largest tile whose double-buffered in+out footprint (~8 MiB f32) fits
# every generation's scoped-VMEM default.
_TILE_CANDIDATES = (4096, 2048, 1024, 512)
_MIN_GRID_STEPS = 4
_MIN_PALLAS_BYTES = 4 * 1024 * 1024  # below this, XLA's fused transpose wins


def _pick_tile(hw):
    """Largest tile that divides hw exactly and still gives a >=4-step grid."""
    for t in _TILE_CANDIDATES:
        if hw % t == 0 and hw // t >= _MIN_GRID_STEPS:
            return t
    return None


def _run_pallas(x3, hw, C, tile, hw_semantics):
    grid = (hw // tile,)
    return pl.pallas_call(
        _permute_kernel,
        out_shape=jax.ShapeDtypeStruct((hw, C), x3.dtype),
        grid=grid,
        in_specs=[
            # Batch dim squeezed & pinned to block 0: only batch-0 rows are DMA'd.
            pl.BlockSpec((None, C, tile), lambda i: (0, 0, i)),
        ],
        out_specs=pl.BlockSpec((tile, C), lambda i: (i, 0)),
        compiler_params=pltpu.CompilerParams(
            dimension_semantics=(hw_semantics,),
        ),
    )(x3)


def test_permute(x):
    """x: (N, C, H, W) with C == 128.  Returns x[0].permute(1, 2, 0).view(-1, 128)."""
    N, C, H, W = x.shape
    assert C == 128, "TestPermute semantics require channel dim == 128"
    hw = H * W

    # Contiguous (metadata-only) reshape; batch-0 slicing happens in the kernel.
    x3 = x.reshape(N, C, hw)

    tile = _pick_tile(hw)
    traffic_bytes = 2 * hw * C * x.dtype.itemsize
    if tile is None or traffic_bytes < _MIN_PALLAS_BYTES:
        # Tiny / odd spatial extents: launch + prologue/epilogue overhead
        # dominates and XLA's fused transpose is faster; also avoids any
        # masked partial-edge stores.
        return jnp.transpose(x3[0], (1, 0))

    # Prefer CORE_PARALLEL so both v7x TensorCores issue DMAs; fall back to
    # plain "parallel" if this chip / jax version rejects it.
    core_parallel = getattr(pltpu, "CORE_PARALLEL", None)
    if core_parallel is not None:
        try:
            return _run_pallas(x3, hw, C, tile, core_parallel)
        except Exception:
            pass
    return _run_pallas(x3, hw, C, tile, "parallel")


if __name__ == "__main__":
    key = jax.random.PRNGKey(0)

    # N=2, C=128 (required by view(-1, 128)), H=W=64 -> H*W=4096:
    # Pallas path with tile=1024, grid=(4,), ~2 MiB double-buffered VMEM/step.
    x = jax.random.normal(key, (2, 128, 64, 64), dtype=jnp.float32)

    out = jax.block_until_ready(test_permute(x))
    ref = jnp.transpose(x[0], (1, 2, 0)).reshape(-1, 128)
    assert out.shape == ref.shape == (64 * 64, 128)
    assert jnp.array_equal(out, ref)

    # Tiny-shape dispatch (XLA fallback) stays correct too.
    x_small = jax.random.normal(jax.random.PRNGKey(1), (2, 128, 4, 8),
                                dtype=jnp.float32)
    out_small = jax.block_until_ready(test_permute(x_small))
    ref_small = jnp.transpose(x_small[0], (1, 2, 0)).reshape(-1, 128)
    assert jnp.array_equal(out_small, ref_small)

    print("KERNEL_OK")
</pallas_src>

<mosaic_0001>
module attributes {stable_mosaic.version = 11 : i64} {
  func.func @_permute_kernel(%arg0: i32, %arg1: memref<1x128x1024xf32, #tpu.memory_space<vmem>>, %arg2: memref<1024x128xf32, #tpu.memory_space<vmem>>) attributes {dimension_semantics = [#tpu.dimension_semantics<core_parallel>], iteration_bounds = array<i64: 4>, scalar_prefetch = 0 : i64, scratch_operands = 0 : i64, tpu.core_type = #tpu.core_type<tc>, window_params = [{transform_indices = @transform_0, window_bounds = array<i64: 1, 128, 1024>}, {transform_indices = @transform_1, window_bounds = array<i64: 1024, 128>}]} {
    %c0 = arith.constant 0 : index
    %c0_0 = arith.constant 0 : index
    %c0_1 = arith.constant 0 : index
    %0 = vector.load %arg1[%c0, %c0_0, %c0_1] : memref<1x128x1024xf32, #tpu.memory_space<vmem>>, vector<1x128x1024xf32>
    %1 = vector.shape_cast %0 : vector<1x128x1024xf32> to vector<128x1024xf32>
    %2 = tpu.transpose %1, [1, 0] : vector<128x1024xf32> -> vector<1024x128xf32>
    %c0_2 = arith.constant 0 : index
    %c0_3 = arith.constant 0 : index
    %3 = vector.load %arg2[%c0_2, %c0_3] : memref<1024x128xf32, #tpu.memory_space<vmem>>, vector<1024x128xf32>
    tpu.vector_store %arg2[%c0_2, %c0_3], %2 {strides = array<i32>} : memref<1024x128xf32, #tpu.memory_space<vmem>>, vector<1024x128xf32>,
    return
  }
  func.func @transform_0(%arg0: i32) -> (i32, i32, i32) {
    %c0_i32 = arith.constant 0 : i32
    %c0_i32_0 = arith.constant 0 : i32
    %c0_i32_1 = arith.constant 0 : i32
    return %c0_i32, %c0_i32_0, %arg0 : i32, i32, i32
  }
  func.func @transform_1(%arg0: i32) -> (i32, i32) {
    %c0_i32 = arith.constant 0 : i32
    %c0_i32_0 = arith.constant 0 : i32
    return %arg0, %c0_i32 : i32, i32
  }
}

module attributes {stable_mosaic.version = 11 : i64} {
  func.func @_permute_kernel(%arg0: i32, %arg1: memref<1x128x1024xf32, #tpu.memory_space<vmem>>, %arg2: memref<1024x128xf32, #tpu.memory_space<vmem>>) attributes {dimension_semantics = [#tpu.dimension_semantics<parallel>], iteration_bounds = array<i64: 4>, scalar_prefetch = 0 : i64, scratch_operands = 0 : i64, tpu.core_type = #tpu.core_type<tc>, window_params = [{transform_indices = @transform_0, window_bounds = array<i64: 1, 128, 1024>}, {transform_indices = @transform_1, window_bounds = array<i64: 1024, 128>}]} {
    %c0 = arith.constant 0 : index
    %c0_0 = arith.constant 0 : index
    %c0_1 = arith.constant 0 : index
    %0 = vector.load %arg1[%c0, %c0_0, %c0_1] : memref<1x128x1024xf32, #tpu.memory_space<vmem>>, vector<1x128x1024xf32>
    %1 = vector.shape_cast %0 : vector<1x128x1024xf32> to vector<128x1024xf32>
    %2 = tpu.transpose %1, [1, 0] : vector<128x1024xf32> -> vector<1024x128xf32>
    %c0_2 = arith.constant 0 : index
    %c0_3 = arith.constant 0 : index
    %3 = vector.load %arg2[%c0_2, %c0_3] : memref<1024x128xf32, #tpu.memory_space<vmem>>, vector<1024x128xf32>
    tpu.vector_store %arg2[%c0_2, %c0_3], %2 {strides = array<i32>} : memref<1024x128xf32, #tpu.memory_space<vmem>>, vector<1024x128xf32>,
    return
  }
  func.func @transform_0(%arg0: i32) -> (i32, i32, i32) {
    %c0_i32 = arith.constant 0 : i32
    %c0_i32_0 = arith.constant 0 : i32
    %c0_i32_1 = arith.constant 0 : i32
    return %c0_i32, %c0_i32_0, %arg0 : i32, i32, i32
  }
  func.func @transform_1(%arg0: i32) -> (i32, i32) {
    %c0_i32 = arith.constant 0 : i32
    %c0_i32_0 = arith.constant 0 : i32
    return %arg0, %c0_i32 : i32, i32
  }
}

</mosaic_0001>

<llo_original>
// kernel: tpu_custom_call.1
$region0: #{tpu_custom_call.1}
  #allocation0 [shape = 'u32[]', space=smem, size = 0x4, offset = 0x4, fixed_abs, tag = 'smem constant byte address 0x4 - core index']
  #allocation1 [shape = 'u32[72,128]{1,0:T(1,128)}', space=vmem, size = 0x9000, scoped, tag = 'internal scratch']
  %s0 = inlined_call_operand.hbm [shape: f32[2,128,4096], index: 0, kind: input, shape index: {}]
  %s1 = inlined_call_operand.hbm [shape: f32[4096,128], index: 1, kind: output, shape index: {}]
  %s2 = sld [smem:[#allocation0]]
  $region41: #{tpu_custom_call.1} parent=0
    _
  %s4 = ssub.s32 1, %s2
  %s5 = scalar_select 0, %s4, %s2
  $region1: #{tpu_custom_call.1} parent=0
    #allocation2 [shape = 'u8[1048576]{0}', space=vmem, size = 0x100000, scoped, tag = 'input window, operand 0']
    #allocation3 [shape = 's32[2]{0}', space=sflag, size = 0x8, scoped, tag = 'scoped memory for tpu_custom_call.1']
    #allocation4 [shape = 's32[2]{0}', space=sflag, size = 0x8, scoped, tag = 'scoped memory for tpu_custom_call.1']
    #allocation5 [shape = 'u8[1048576]{0}', space=vmem, size = 0x100000, scoped, tag = 'output window, operand 0']
    %6 = vsyncpa [#allocation3], 0
    %s7 = scalar_lea.sflag [#allocation3], 1
    %8 = vsyncpa %s7, 0
    %9 = vsyncpa [#allocation4], 0
    %s10 = scalar_lea.sflag [#allocation4], 1
    %11 = vsyncpa %s10, 0
    loop: start=0, step=1, limit=6
    $region2: #{tpu_custom_call.1} parent=1 // loop_pre_header
      _
    $region3: #{tpu_custom_call.1} parent=1 // loop_header
      %s13 = sphi 0, %s17
      %p14 = scmp.ge.s32.totalorder %s13, 6
      %s23 = sphi 0, %s25
      %s26 = sphi 0, %s23
      %s27 = sphi 0, %s26
      %s43 = sphi 0, %s27
      %s49 = sphi 0, %s51
      %s52 = sphi 0, %s49
      %s53 = sphi 0, %s52
      %s69 = sphi 0, %s53
    $region4: #{tpu_custom_call.1} parent=1 // loop_header_branch
      %16 = sbr.rel (%p14) target = $region8
    $region5: #{tpu_custom_call.1} parent=1 // loop_body
      %s18 = ssub.s32 %s13, 1
      %s19 = ssub.s32 %s13, 2
      %s20 = sadd.s32 %s13, 1
      %s21 = ssub.s32 %s13, %s20
      %p22 = scmp.eq.s32.totalorder %s21, 0
      %s24 = sadd.s32 %s23, 1
      %s25 = scalar_select %p22, %s23, %s24
      %p28 = pneg %p22
      %p29 = scmp.eq.s32.totalorder %s13, 3
      %p30 = por %p28, %p29
      %p31 = scmp.ne.s32.totalorder %s23, %s26
      %p32 = scmp.eq.s32.totalorder %s13, 0
      %p33 = por %p31, %p32
      %p34 = scmp.ne.s32.totalorder %s23, %s26
      %p35 = scmp.eq.s32.totalorder %s18, 3
      %p36 = por %p34, %p35
      %p37 = scmp.ne.s32.totalorder %s26, %s27
      %p38 = scmp.eq.s32.totalorder %s18, 0
      %p39 = por %p37, %p38
      %p40 = scmp.ne.s32.totalorder %s26, %s27
      %p41 = scmp.eq.s32.totalorder %s19, 3
      %p42 = por %p40, %p41
      %p44 = scmp.ne.s32.totalorder %s27, %s43
      %p45 = scmp.eq.s32.totalorder %s19, 0
      %p46 = por %p44, %p45
      %s47 = ssub.s32 %s13, %s20
      %p48 = scmp.eq.s32.totalorder %s47, 0
      %s50 = sadd.s32 %s49, 1
      %s51 = scalar_select %p48, %s49, %s50
      %p54 = pneg %p48
      %p55 = scmp.eq.s32.totalorder %s13, 3
      %p56 = por %p54, %p55
      %p57 = scmp.ne.s32.totalorder %s49, %s52
      %p58 = scmp.eq.s32.totalorder %s13, 0
      %p59 = por %p57, %p58
      %p60 = scmp.ne.s32.totalorder %s49, %s52
      %p61 = scmp.eq.s32.totalorder %s18, 3
      %p62 = por %p60, %p61
      %p63 = scmp.ne.s32.totalorder %s52, %s53
      %p64 = scmp.eq.s32.totalorder %s18, 0
      %p65 = por %p63, %p64
      %p66 = scmp.ne.s32.totalorder %s52, %s53
      %p67 = scmp.eq.s32.totalorder %s19, 3
      %p68 = por %p66, %p67
      %p70 = scmp.ne.s32.totalorder %s53, %s69
      %p71 = scmp.eq.s32.totalorder %s19, 0
      %p72 = por %p70, %p71
      %p73 = scmp.le.s32.totalorder 1, %s13
      %p74 = scmp.lt.s32.totalorder %s13, 5
      %p75 = pnand %p73, %p74
      %p76 = pneg %p75
      // Predicated region
      $region9: #{tpu_custom_call.1} parent=5 // pred_check
        _
      $region10: #{tpu_custom_call.1} parent=5 // pred_check_branch
        %78 = sbr.rel (%p75) target = $region12
      $region11: #{tpu_custom_call.1} parent=5 // pred_region
        %s79 = ssub.s32 %s13, 1
      $region12: #{tpu_custom_call.1} parent=5 // pred_fallthru
        _
      %p80 = scmp.lt.s32.totalorder %s13, 4
      // Predicated region
      $region13: #{tpu_custom_call.1} parent=5 // pred_check
        %p81 = pneg %p80
      $region14: #{tpu_custom_call.1} parent=5 // pred_check_branch
        %83 = sbr.rel (%p81) target = $region16
      $region15: #{tpu_custom_call.1} parent=5 // pred_region
        // Predicated region
        $region17: #{tpu_custom_call.1} parent=15 // pred_check
          %p84 = pneg %p33
        $region18: #{tpu_custom_call.1} parent=15 // pred_check_branch
          %86 = sbr.rel (%p84) target = $region20
        $region19: #{tpu_custom_call.1} parent=15 // pred_region
          %s87 = sand.u32 %s23, 1
          %s88 = scalar_lea.sflag [#allocation3], %s87
          %s89 = sand.u32 %s23, 1
          %s90 = smul.addr %s89, 1024
          %s91 = scalar_lea.vmem [#allocation2], %s90
          %s92 = smul.u32 8, %s13
          %94 = vsyncadd %s88, 0
          %s95 = smul.addr %s92, 8
          %s96 = scalar_lea.hbm %s0, %s95
          %s97 = sshll.u32 %s96, 4
          %s98 = int_to_ptr.hbm [resolvable:$true] %s97
          %s99 = sshll.u32 %s91, 4
          %s100 = int_to_ptr.vmem [resolvable:$true] %s99
          %105 = dma.hbm_to_vmem [thread:$0]  %s98, 16384, %s100, %s88, 4096, 1024, 64
        $region20: #{tpu_custom_call.1} parent=15 // pred_fallthru
          _
      $region16: #{tpu_custom_call.1} parent=5 // pred_fallthru
        _
      %p106 = scmp.le.s32.totalorder 1, %s13
      %p107 = scmp.lt.s32.totalorder %s13, 5
      %p108 = pnand %p106, %p107
      %p109 = pneg %p108
      // Predicated region
      $region21: #{tpu_custom_call.1} parent=5 // pred_check
        _
      $region22: #{tpu_custom_call.1} parent=5 // pred_check_branch
        %111 = sbr.rel (%p108) target = $region24
      $region23: #{tpu_custom_call.1} parent=5 // pred_region
        %s112 = ssub.s32 %s13, 1
        %s113 = sand.u32 %s26, 1
        %s114 = scalar_lea.sflag [#allocation3], %s113
        %s115 = sand.u32 %s26, 1
        %s116 = smul.addr %s115, 1024
        %s117 = scalar_lea.vmem [#allocation2], %s116
        // Predicated region
        $region25: #{tpu_custom_call.1} parent=23 // pred_check
          %p118 = pneg %p39
        $region26: #{tpu_custom_call.1} parent=23 // pred_check_branch
          %120 = sbr.rel (%p118) target = $region28
        $region27: #{tpu_custom_call.1} parent=23 // pred_region
          %122 = dma.done %s114, 16384
        $region28: #{tpu_custom_call.1} parent=23 // pred_fallthru
          _
        %s123 = sand.u32 %s26, 1
        %s124 = scalar_lea.sflag [#allocation3], %s123
        %s125 = sand.u32 %s26, 1
        %s126 = smul.addr %s125, 1024
        %s127 = scalar_lea.vmem [#allocation2], %s126
        %p128 = pneg %p39
        %p129 = pneg %p36
        %p130 = pneg %p65
        %p131 = pneg %p62
        %s132 = sand.u32 %s52, 1
        %s133 = scalar_lea.sflag [#allocation4], %s132
        %s134 = sand.u32 %s52, 1
        %s135 = smul.addr %s134, 1024
        %s136 = scalar_lea.vmem [#allocation5], %s135
        %s137 = smul.u32 8, %s18
        %s138 = smul.u32 128, %s18
        %v139 = vld [vmem:[%s117] sm:$0xff]
        %v140 = vld [vmem:[%s117 + $0x8] sm:$0xff]
        %v141 = vld [vmem:[%s117 + $0x10] sm:$0xff]
        %v142 = vld [vmem:[%s117 + $0x18] sm:$0xff]
        %v143 = vld [vmem:[%s117 + $0x20] sm:$0xff]
        %v144 = vld [vmem:[%s117 + $0x28] sm:$0xff]
        %v145 = vld [vmem:[%s117 + $0x30] sm:$0xff]
        %v146 = vld [vmem:[%s117 + $0x38] sm:$0xff]
        %v147 = vld [vmem:[%s117 + $0x40] sm:$0xff]
        %v148 = vld [vmem:[%s117 + $0x48] sm:$0xff]
        %v149 = vld [vmem:[%s117 + $0x50] sm:$0xff]
        %v150 = vld [vmem:[%s117 + $0x58] sm:$0xff]
        %v151 = vld [vmem:[%s117 + $0x60] sm:$0xff]
        %v152 = vld [vmem:[%s117 + $0x68] sm:$0xff]
        %v153 = vld [vmem:[%s117 + $0x70] sm:$0xff]
        %v154 = vld [vmem:[%s117 + $0x78] sm:$0xff]
        %v155 = vld [vmem:[%s117 + $0x80] sm:$0xff]
        %v156 = vld [vmem:[%s117 + $0x88] sm:$0xff]
        %v157 = vld [vmem:[%s117 + $0x90] sm:$0xff]
        %v158 = vld [vmem:[%s117 + $0x98] sm:$0xff]
        %v159 = vld [vmem:[%s117 + $0xa0] sm:$0xff]
        %v160 = vld [vmem:[%s117 + $0xa8] sm:$0xff]
        %v161 = vld [vmem:[%s117 + $0xb0] sm:$0xff]
        %v162 = vld [vmem:[%s117 + $0xb8] sm:$0xff]
        %v163 = vld [vmem:[%s117 + $0xc0] sm:$0xff]
        %v164 = vld [vmem:[%s117 + $0xc8] sm:$0xff]
        %v165 = vld [vmem:[%s117 + $0xd0] sm:$0xff]
        %v166 = vld [vmem:[%s117 + $0xd8] sm:$0xff]
        %v167 = vld [vmem:[%s117 + $0xe0] sm:$0xff]
        %v168 = vld [vmem:[%s117 + $0xe8] sm:$0xff]
        %v169 = vld [vmem:[%s117 + $0xf0] sm:$0xff]
        %v170 = vld [vmem:[%s117 + $0xf8] sm:$0xff]
        %v171 = vld [vmem:[%s117 + $0x100] sm:$0xff]
        %v172 = vld [vmem:[%s117 + $0x108] sm:$0xff]
        %v173 = vld [vmem:[%s117 + $0x110] sm:$0xff]
        %v174 = vld [vmem:[%s117 + $0x118] sm:$0xff]
        %v175 = vld [vmem:[%s117 + $0x120] sm:$0xff]
        %v176 = vld [vmem:[%s117 + $0x128] sm:$0xff]
        %v177 = vld [vmem:[%s117 + $0x130] sm:$0xff]
        %v178 = vld [vmem:[%s117 + $0x138] sm:$0xff]
        %v179 = vld [vmem:[%s117 + $0x140] sm:$0xff]
        %v180 = vld [vmem:[%s117 + $0x148] sm:$0xff]
        %v181 = vld [vmem:[%s117 + $0x150] sm:$0xff]
        %v182 = vld [vmem:[%s117 + $0x158] sm:$0xff]
        %v183 = vld [vmem:[%s117 + $0x160] sm:$0xff]
        %v184 = vld [vmem:[%s117 + $0x168] sm:$0xff]
        %v185 = vld [vmem:[%s117 + $0x170] sm:$0xff]
        %v186 = vld [vmem:[%s117 + $0x178] sm:$0xff]
        %v187 = vld [vmem:[%s117 + $0x180] sm:$0xff]
        %v188 = vld [vmem:[%s117 + $0x188] sm:$0xff]
        %v189 = vld [vmem:[%s117 + $0x190] sm:$0xff]
        %v190 = vld [vmem:[%s117 + $0x198] sm:$0xff]
        %v191 = vld [vmem:[%s117 + $0x1a0] sm:$0xff]
        %v192 = vld [vmem:[%s117 + $0x1a8] sm:$0xff]
        %v193 = vld [vmem:[%s117 + $0x1b0] sm:$0xff]
        %v194 = vld [vmem:[%s117 + $0x1b8] sm:$0xff]
        %v195 = vld [vmem:[%s117 + $0x1c0] sm:$0xff]
        %v196 = vld [vmem:[%s117 + $0x1c8] sm:$0xff]
        %v197 = vld [vmem:[%s117 + $0x1d0] sm:$0xff]
        %v198 = vld [vmem:[%s117 + $0x1d8] sm:$0xff]
        %v199 = vld [vmem:[%s117 + $0x1e0] sm:$0xff]
        %v200 = vld [vmem:[%s117 + $0x1e8] sm:$0xff]
        %v201 = vld [vmem:[%s117 + $0x1f0] sm:$0xff]
        %v202 = vld [vmem:[%s117 + $0x1f8] sm:$0xff]
        %v203 = vld [vmem:[%s117 + $0x200] sm:$0xff]
        %v204 = vld [vmem:[%s117 + $0x208] sm:$0xff]
        %v205 = vld [vmem:[%s117 + $0x210] sm:$0xff]
        %v206 = vld [vmem:[%s117 + $0x218] sm:$0xff]
        %v207 = vld [vmem:[%s117 + $0x220] sm:$0xff]
        %v208 = vld [vmem:[%s117 + $0x228] sm:$0xff]
        %v209 = vld [vmem:[%s117 + $0x230] sm:$0xff]
        %v210 = vld [vmem:[%s117 + $0x238] sm:$0xff]
        %v211 = vld [vmem:[%s117 + $0x240] sm:$0xff]
        %v212 = vld [vmem:[%s117 + $0x248] sm:$0xff]
        %v213 = vld [vmem:[%s117 + $0x250] sm:$0xff]
        %v214 = vld [vmem:[%s117 + $0x258] sm:$0xff]
        %v215 = vld [vmem:[%s117 + $0x260] sm:$0xff]
        %v216 = vld [vmem:[%s117 + $0x268] sm:$0xff]
        %v217 = vld [vmem:[%s117 + $0x270] sm:$0xff]
        %v218 = vld [vmem:[%s117 + $0x278] sm:$0xff]
        %v219 = vld [vmem:[%s117 + $0x280] sm:$0xff]
        %v220 = vld [vmem:[%s117 + $0x288] sm:$0xff]
        %v221 = vld [vmem:[%s117 + $0x290] sm:$0xff]
        %v222 = vld [vmem:[%s117 + $0x298] sm:$0xff]
        %v223 = vld [vmem:[%s117 + $0x2a0] sm:$0xff]
        %v224 = vld [vmem:[%s117 + $0x2a8] sm:$0xff]
        %v225 = vld [vmem:[%s117 + $0x2b0] sm:$0xff]
        %v226 = vld [vmem:[%s117 + $0x2b8] sm:$0xff]
        %v227 = vld [vmem:[%s117 + $0x2c0] sm:$0xff]
        %v228 = vld [vmem:[%s117 + $0x2c8] sm:$0xff]
        %v229 = vld [vmem:[%s117 + $0x2d0] sm:$0xff]
        %v230 = vld [vmem:[%s117 + $0x2d8] sm:$0xff]
        %v231 = vld [vmem:[%s117 + $0x2e0] sm:$0xff]
        %v232 = vld [vmem:[%s117 + $0x2e8] sm:$0xff]
        %v233 = vld [vmem:[%s117 + $0x2f0] sm:$0xff]
        %v234 = vld [vmem:[%s117 + $0x2f8] sm:$0xff]
        %v235 = vld [vmem:[%s117 + $0x300] sm:$0xff]
        %v236 = vld [vmem:[%s117 + $0x308] sm:$0xff]
        %v237 = vld [vmem:[%s117 + $0x310] sm:$0xff]
        %v238 = vld [vmem:[%s117 + $0x318] sm:$0xff]
        %v239 = vld [vmem:[%s117 + $0x320] sm:$0xff]
        %v240 = vld [vmem:[%s117 + $0x328] sm:$0xff]
        %v241 = vld [vmem:[%s117 + $0x330] sm:$0xff]
        %v242 = vld [vmem:[%s117 + $0x338] sm:$0xff]
        %v243 = vld [vmem:[%s117 + $0x340] sm:$0xff]
        %v244 = vld [vmem:[%s117 + $0x348] sm:$0xff]
        %v245 = vld [vmem:[%s117 + $0x350] sm:$0xff]
        %v246 = vld [vmem:[%s117 + $0x358] sm:$0xff]
        %v247 = vld [vmem:[%s117 + $0x360] sm:$0xff]
        %v248 = vld [vmem:[%s117 + $0x368] sm:$0xff]
        %v249 = vld [vmem:[%s117 + $0x370] sm:$0xff]
        %v250 = vld [vmem:[%s117 + $0x378] sm:$0xff]
        %v251 = vld [vmem:[%s117 + $0x380] sm:$0xff]
        %v252 = vld [vmem:[%s117 + $0x388] sm:$0xff]
        %v253 = vld [vmem:[%s117 + $0x390] sm:$0xff]
        %v254 = vld [vmem:[%s117 + $0x398] sm:$0xff]
        %v255 = vld [vmem:[%s117 + $0x3a0] sm:$0xff]
        %v256 = vld [vmem:[%s117 + $0x3a8] sm:$0xff]
        %v257 = vld [vmem:[%s117 + $0x3b0] sm:$0xff]
        %v258 = vld [vmem:[%s117 + $0x3b8] sm:$0xff]
        %v259 = vld [vmem:[%s117 + $0x3c0] sm:$0xff]
        %v260 = vld [vmem:[%s117 + $0x3c8] sm:$0xff]
        %v261 = vld [vmem:[%s117 + $0x3d0] sm:$0xff]
        %v262 = vld [vmem:[%s117 + $0x3d8] sm:$0xff]
        %v263 = vld [vmem:[%s117 + $0x3e0] sm:$0xff]
        %v264 = vld [vmem:[%s117 + $0x3e8] sm:$0xff]
        %v265 = vld [vmem:[%s117 + $0x3f0] sm:$0xff]
        %v266 = vld [vmem:[%s117 + $0x3f8] sm:$0xff]
        %267 = vxpose.xlu0.b32.start [1/16] %v139, 128
        %268 = vxpose.xlu0.b32.cont [2/16] %v147, 128
        %269 = vxpose.xlu0.b32.cont [3/16] %v155, 128
        %270 = vxpose.xlu0.b32.cont [4/16] %v163, 128
        %271 = vxpose.xlu0.b32.cont [5/16] %v171, 128
        %272 = vxpose.xlu0.b32.cont [6/16] %v179, 128
        %273 = vxpose.xlu0.b32.cont [7/16] %v187, 128
        %274 = vxpose.xlu0.b32.cont [8/16] %v195, 128
        %275 = vxpose.xlu0.b32.cont [9/16] %v203, 128
        %276 = vxpose.xlu0.b32.cont [10/16] %v211, 128
        %277 = vxpose.xlu0.b32.cont [11/16] %v219, 128
        %278 = vxpose.xlu0.b32.cont [12/16] %v227, 128
        %279 = vxpose.xlu0.b32.cont [13/16] %v235, 128
        %280 = vxpose.xlu0.b32.cont [14/16] %v243, 128
        %281 = vxpose.xlu0.b32.cont [15/16] %v251, 128
        %282 = vxpose.xlu0.b32.end [16/16] %v259, 128
        %v283 = vpop.trf.xlu0
        %v284 = vpop.trf.xlu0
        %v285 = vpop.trf.xlu0
        %v286 = vpop.trf.xlu0
        %v287 = vpop.trf.xlu0
        %v288 = vpop.trf.xlu0
        %v289 = vpop.trf.xlu0
        %v290 = vpop.trf.xlu0
        %v291 = vpop.trf.xlu0
        %v292 = vpop.trf.xlu0
        %v293 = vpop.trf.xlu0
        %v294 = vpop.trf.xlu0
        %v295 = vpop.trf.xlu0
        %v296 = vpop.trf.xlu0
        %v297 = vpop.trf.xlu0
        %v298 = vpop.trf.xlu0
        %299 = vxpose.xlu0.b32.start [1/16] %v140, 128
        %300 = vxpose.xlu0.b32.cont [2/16] %v148, 128
        %301 = vxpose.xlu0.b32.cont [3/16] %v156, 128
        %302 = vxpose.xlu0.b32.cont [4/16] %v164, 128
        %303 = vxpose.xlu0.b32.cont [5/16] %v172, 128
        %304 = vxpose.xlu0.b32.cont [6/16] %v180, 128
        %305 = vxpose.xlu0.b32.cont [7/16] %v188, 128
        %306 = vxpose.xlu0.b32.cont [8/16] %v196, 128
        %307 = vxpose.xlu0.b32.cont [9/16] %v204, 128
        %308 = vxpose.xlu0.b32.cont [10/16] %v212, 128
        %309 = vxpose.xlu0.b32.cont [11/16] %v220, 128
        %310 = vxpose.xlu0.b32.cont [12/16] %v228, 128
        %311 = vxpose.xlu0.b32.cont [13/16] %v236, 128
        %312 = vxpose.xlu0.b32.cont [14/16] %v244, 128
        %313 = vxpose.xlu0.b32.cont [15/16] %v252, 128
        %314 = vxpose.xlu0.b32.end [16/16] %v260, 128
        %v315 = vpop.trf.xlu0
        %v316 = vpop.trf.xlu0
        %v317 = vpop.trf.xlu0
        %v318 = vpop.trf.xlu0
        %v319 = vpop.trf.xlu0
        %v320 = vpop.trf.xlu0
        %v321 = vpop.trf.xlu0
        %v322 = vpop.trf.xlu0
        %v323 = vpop.trf.xlu0
        %v324 = vpop.trf.xlu0
        %v325 = vpop.trf.xlu0
        %v326 = vpop.trf.xlu0
        %v327 = vpop.trf.xlu0
        %v328 = vpop.trf.xlu0
        %v329 = vpop.trf.xlu0
        %v330 = vpop.trf.xlu0
        %331 = vxpose.xlu0.b32.start [1/16] %v141, 128
        %332 = vxpose.xlu0.b32.cont [2/16] %v149, 128
        %333 = vxpose.xlu0.b32.cont [3/16] %v157, 128
        %334 = vxpose.xlu0.b32.cont [4/16] %v165, 128
        %335 = vxpose.xlu0.b32.cont [5/16] %v173, 128
        %336 = vxpose.xlu0.b32.cont [6/16] %v181, 128
        %337 = vxpose.xlu0.b32.cont [7/16] %v189, 128
        %338 = vxpose.xlu0.b32.cont [8/16] %v197, 128
        %339 = vxpose.xlu0.b32.cont [9/16] %v205, 128
        %340 = vxpose.xlu0.b32.cont [10/16] %v213, 128
        %341 = vxpose.xlu0.b32.cont [11/16] %v221, 128
        %342 = vxpose.xlu0.b32.cont [12/16] %v229, 128
        %343 = vxpose.xlu0.b32.cont [13/16] %v237, 128
        %344 = vxpose.xlu0.b32.cont [14/16] %v245, 128
        %345 = vxpose.xlu0.b32.cont [15/16] %v253, 128
        %346 = vxpose.xlu0.b32.end [16/16] %v261, 128
        %v347 = vpop.trf.xlu0
        %v348 = vpop.trf.xlu0
        %v349 = vpop.trf.xlu0
        %v350 = vpop.trf.xlu0
        %v351 = vpop.trf.xlu0
        %v352 = vpop.trf.xlu0
        %v353 = vpop.trf.xlu0
        %v354 = vpop.trf.xlu0
        %v355 = vpop.trf.xlu0
        %v356 = vpop.trf.xlu0
        %v357 = vpop.trf.xlu0
        %v358 = vpop.trf.xlu0
        %v359 = vpop.trf.xlu0
        %v360 = vpop.trf.xlu0
        %v361 = vpop.trf.xlu0
        %v362 = vpop.trf.xlu0
        %363 = vxpose.xlu0.b32.start [1/16] %v142, 128
        %364 = vxpose.xlu0.b32.cont [2/16] %v150, 128
        %365 = vxpose.xlu0.b32.cont [3/16] %v158, 128
        %366 = vxpose.xlu0.b32.cont [4/16] %v166, 128
        %367 = vxpose.xlu0.b32.cont [5/16] %v174, 128
        %368 = vxpose.xlu0.b32.cont [6/16] %v182, 128
        %369 = vxpose.xlu0.b32.cont [7/16] %v190, 128
        %370 = vxpose.xlu0.b32.cont [8/16] %v198, 128
        %371 = vxpose.xlu0.b32.cont [9/16] %v206, 128
        %372 = vxpose.xlu0.b32.cont [10/16] %v214, 128
        %373 = vxpose.xlu0.b32.cont [11/16] %v222, 128
        %374 = vxpose.xlu0.b32.cont [12/16] %v230, 128
        %375 = vxpose.xlu0.b32.cont [13/16] %v238, 128
        %376 = vxpose.xlu0.b32.cont [14/16] %v246, 128
        %377 = vxpose.xlu0.b32.cont [15/16] %v254, 128
        %378 = vxpose.xlu0.b32.end [16/16] %v262, 128
        %v379 = vpop.trf.xlu0
        %v380 = vpop.trf.xlu0
        %v381 = vpop.trf.xlu0
        %v382 = vpop.trf.xlu0
        %v383 = vpop.trf.xlu0
        %v384 = vpop.trf.xlu0
        %v385 = vpop.trf.xlu0
        %v386 = vpop.trf.xlu0
        %v387 = vpop.trf.xlu0
        %v388 = vpop.trf.xlu0
        %v389 = vpop.trf.xlu0
        %v390 = vpop.trf.xlu0
        %v391 = vpop.trf.xlu0
        %v392 = vpop.trf.xlu0
        %v393 = vpop.trf.xlu0
        %v394 = vpop.trf.xlu0
        %395 = vxpose.xlu0.b32.start [1/16] %v143, 128
        %396 = vxpose.xlu0.b32.cont [2/16] %v151, 128
        %397 = vxpose.xlu0.b32.cont [3/16] %v159, 128
        %398 = vxpose.xlu0.b32.cont [4/16] %v167, 128
        %399 = vxpose.xlu0.b32.cont [5/16] %v175, 128
        %400 = vxpose.xlu0.b32.cont [6/16] %v183, 128
        %401 = vxpose.xlu0.b32.cont [7/16] %v191, 128
        %402 = vxpose.xlu0.b32.cont [8/16] %v199, 128
        %403 = vxpose.xlu0.b32.cont [9/16] %v207, 128
        %404 = vxpose.xlu0.b32.cont [10/16] %v215, 128
        %405 = vxpose.xlu0.b32.cont [11/16] %v223, 128
        %406 = vxpose.xlu0.b32.cont [12/16] %v231, 128
        %407 = vxpose.xlu0.b32.cont [13/16] %v239, 128
        %408 = vxpose.xlu0.b32.cont [14/16] %v247, 128
        %409 = vxpose.xlu0.b32.cont [15/16] %v255, 128
        %410 = vxpose.xlu0.b32.end [16/16] %v263, 128
        %v411 = vpop.trf.xlu0
        %v412 = vpop.trf.xlu0
        %v413 = vpop.trf.xlu0
        %v414 = vpop.trf.xlu0
        %v415 = vpop.trf.xlu0
        %v416 = vpop.trf.xlu0
        %v417 = vpop.trf.xlu0
        %v418 = vpop.trf.xlu0
        %v419 = vpop.trf.xlu0
        %v420 = vpop.trf.xlu0
        %v421 = vpop.trf.xlu0
        %v422 = vpop.trf.xlu0
        %v423 = vpop.trf.xlu0
        %v424 = vpop.trf.xlu0
        %v425 = vpop.trf.xlu0
        %v426 = vpop.trf.xlu0
        %427 = vxpose.xlu0.b32.start [1/16] %v144, 128
        %428 = vxpose.xlu0.b32.cont [2/16] %v152, 128
        %429 = vxpose.xlu0.b32.cont [3/16] %v160, 128
        %430 = vxpose.xlu0.b32.cont [4/16] %v168, 128
        %431 = vxpose.xlu0.b32.cont [5/16] %v176, 128
        %432 = vxpose.xlu0.b32.cont [6/16] %v184, 128
        %433 = vxpose.xlu0.b32.cont [7/16] %v192, 128
        %434 = vxpose.xlu0.b32.cont [8/16] %v200, 128
        %435 = vxpose.xlu0.b32.cont [9/16] %v208, 128
        %436 = vxpose.xlu0.b32.cont [10/16] %v216, 128
        %437 = vxpose.xlu0.b32.cont [11/16] %v224, 128
        %438 = vxpose.xlu0.b32.cont [12/16] %v232, 128
        %439 = vxpose.xlu0.b32.cont [13/16] %v240, 128
        %440 = vxpose.xlu0.b32.cont [14/16] %v248, 128
        %441 = vxpose.xlu0.b32.cont [15/16] %v256, 128
        %442 = vxpose.xlu0.b32.end [16/16] %v264, 128
        %v443 = vpop.trf.xlu0
        %v444 = vpop.trf.xlu0
        %v445 = vpop.trf.xlu0
        %v446 = vpop.trf.xlu0
        %v447 = vpop.trf.xlu0
        %v448 = vpop.trf.xlu0
        %v449 = vpop.trf.xlu0
        %v450 = vpop.trf.xlu0
        %v451 = vpop.trf.xlu0
        %v452 = vpop.trf.xlu0
        %v453 = vpop.trf.xlu0
        %v454 = vpop.trf.xlu0
        %v455 = vpop.trf.xlu0
        %v456 = vpop.trf.xlu0
        %v457 = vpop.trf.xlu0
        %v458 = vpop.trf.xlu0
        %459 = vxpose.xlu0.b32.start [1/16] %v145, 128
        %460 = vxpose.xlu0.b32.cont [2/16] %v153, 128
        %461 = vxpose.xlu0.b32.cont [3/16] %v161, 128
        %462 = vxpose.xlu0.b32.cont [4/16] %v169, 128
        %463 = vxpose.xlu0.b32.cont [5/16] %v177, 128
        %464 = vxpose.xlu0.b32.cont [6/16] %v185, 128
        %465 = vxpose.xlu0.b32.cont [7/16] %v193, 128
        %466 = vxpose.xlu0.b32.cont [8/16] %v201, 128
        %467 = vxpose.xlu0.b32.cont [9/16] %v209, 128
        %468 = vxpose.xlu0.b32.cont [10/16] %v217, 128
        %469 = vxpose.xlu0.b32.cont [11/16] %v225, 128
        %470 = vxpose.xlu0.b32.cont [12/16] %v233, 128
        %471 = vxpose.xlu0.b32.cont [13/16] %v241, 128
        %472 = vxpose.xlu0.b32.cont [14/16] %v249, 128
        %473 = vxpose.xlu0.b32.cont [15/16] %v257, 128
        %474 = vxpose.xlu0.b32.end [16/16] %v265, 128
        %v475 = vpop.trf.xlu0
        %v476 = vpop.trf.xlu0
        %v477 = vpop.trf.xlu0
        %v478 = vpop.trf.xlu0
        %v479 = vpop.trf.xlu0
        %v480 = vpop.trf.xlu0
        %v481 = vpop.trf.xlu0
        %v482 = vpop.trf.xlu0
        %v483 = vpop.trf.xlu0
        %v484 = vpop.trf.xlu0
        %v485 = vpop.trf.xlu0
        %v486 = vpop.trf.xlu0
        %v487 = vpop.trf.xlu0
        %v488 = vpop.trf.xlu0
        %v489 = vpop.trf.xlu0
        %v490 = vpop.trf.xlu0
        %491 = vxpose.xlu0.b32.start [1/16] %v146, 128
        %492 = vxpose.xlu0.b32.cont [2/16] %v154, 128
        %493 = vxpose.xlu0.b32.cont [3/16] %v162, 128
        %494 = vxpose.xlu0.b32.cont [4/16] %v170, 128
        %495 = vxpose.xlu0.b32.cont [5/16] %v178, 128
        %496 = vxpose.xlu0.b32.cont [6/16] %v186, 128
        %497 = vxpose.xlu0.b32.cont [7/16] %v194, 128
        %498 = vxpose.xlu0.b32.cont [8/16] %v202, 128
        %499 = vxpose.xlu0.b32.cont [9/16] %v210, 128
        %500 = vxpose.xlu0.b32.cont [10/16] %v218, 128
        %501 = vxpose.xlu0.b32.cont [11/16] %v226, 128
        %502 = vxpose.xlu0.b32.cont [12/16] %v234, 128
        %503 = vxpose.xlu0.b32.cont [13/16] %v242, 128
        %504 = vxpose.xlu0.b32.cont [14/16] %v250, 128
        %505 = vxpose.xlu0.b32.cont [15/16] %v258, 128
        %506 = vxpose.xlu0.b32.end [16/16] %v266, 128
        %v507 = vpop.trf.xlu0
        %v508 = vpop.trf.xlu0
        %v509 = vpop.trf.xlu0
        %v510 = vpop.trf.xlu0
        %v511 = vpop.trf.xlu0
        %v512 = vpop.trf.xlu0
        %v513 = vpop.trf.xlu0
        %v514 = vpop.trf.xlu0
        %v515 = vpop.trf.xlu0
        %v516 = vpop.trf.xlu0
        %v517 = vpop.trf.xlu0
        %v518 = vpop.trf.xlu0
        %v519 = vpop.trf.xlu0
        %v520 = vpop.trf.xlu0
        %v521 = vpop.trf.xlu0
        %v522 = vpop.trf.xlu0
        %523 = vst [vmem:[%s136] sm:$0xff] %v283
        %524 = vst [vmem:[%s136 + $0x8] sm:$0xff] %v284
        %525 = vst [vmem:[%s136 + $0x10] sm:$0xff] %v285
        %526 = vst [vmem:[%s136 + $0x18] sm:$0xff] %v286
        %527 = vst [vmem:[%s136 + $0x20] sm:$0xff] %v287
        %528 = vst [vmem:[%s136 + $0x28] sm:$0xff] %v288
        %529 = vst [vmem:[%s136 + $0x30] sm:$0xff] %v289
        %530 = vst [vmem:[%s136 + $0x38] sm:$0xff] %v290
        %531 = vst [vmem:[%s136 + $0x40] sm:$0xff] %v291
        %532 = vst [vmem:[%s136 + $0x48] sm:$0xff] %v292
        %533 = vst [vmem:[%s136 + $0x50] sm:$0xff] %v293
        %534 = vst [vmem:[%s136 + $0x58] sm:$0xff] %v294
        %535 = vst [vmem:[%s136 + $0x60] sm:$0xff] %v295
        %536 = vst [vmem:[%s136 + $0x68] sm:$0xff] %v296
        %537 = vst [vmem:[%s136 + $0x70] sm:$0xff] %v297
        %538 = vst [vmem:[%s136 + $0x78] sm:$0xff] %v298
        %539 = vst [vmem:[%s136 + $0x80] sm:$0xff] %v315
        %540 = vst [vmem:[%s136 + $0x88] sm:$0xff] %v316
        %541 = vst [vmem:[%s136 + $0x90] sm:$0xff] %v317
        %542 = vst [vmem:[%s136 + $0x98] sm:$0xff] %v318
        %543 = vst [vmem:[%s136 + $0xa0] sm:$0xff] %v319
        %544 = vst [vmem:[%s136 + $0xa8] sm:$0xff] %v320
        %545 = vst [vmem:[%s136 + $0xb0] sm:$0xff] %v321
        %546 = vst [vmem:[%s136 + $0xb8] sm:$0xff] %v322
        %547 = vst [vmem:[%s136 + $0xc0] sm:$0xff] %v323
        %548 = vst [vmem:[%s136 + $0xc8] sm:$0xff] %v324
        %549 = vst [vmem:[%s136 + $0xd0] sm:$0xff] %v325
        %550 = vst [vmem:[%s136 + $0xd8] sm:$0xff] %v326
        %551 = vst [vmem:[%s136 + $0xe0] sm:$0xff] %v327
        %552 = vst [vmem:[%s136 + $0xe8] sm:$0xff] %v328
        %553 = vst [vmem:[%s136 + $0xf0] sm:$0xff] %v329
        %554 = vst [vmem:[%s136 + $0xf8] sm:$0xff] %v330
        %555 = vst [vmem:[%s136 + $0x100] sm:$0xff] %v347
        %556 = vst [vmem:[%s136 + $0x108] sm:$0xff] %v348
        %557 = vst [vmem:[%s136 + $0x110] sm:$0xff] %v349
        %558 = vst [vmem:[%s136 + $0x118] sm:$0xff] %v350
        %559 = vst [vmem:[%s136 + $0x120] sm:$0xff] %v351
        %560 = vst [vmem:[%s136 + $0x128] sm:$0xff] %v352
        %561 = vst [vmem:[%s136 + $0x130] sm:$0xff] %v353
        %562 = vst [vmem:[%s136 + $0x138] sm:$0xff] %v354
        %563 = vst [vmem:[%s136 + $0x140] sm:$0xff] %v355
        %564 = vst [vmem:[%s136 + $0x148] sm:$0xff] %v356
        %565 = vst [vmem:[%s136 + $0x150] sm:$0xff] %v357
        %566 = vst [vmem:[%s136 + $0x158] sm:$0xff] %v358
        %567 = vst [vmem:[%s136 + $0x160] sm:$0xff] %v359
        %568 = vst [vmem:[%s136 + $0x168] sm:$0xff] %v360
        %569 = vst [vmem:[%s136 + $0x170] sm:$0xff] %v361
        %570 = vst [vmem:[%s136 + $0x178] sm:$0xff] %v362
        %571 = vst [vmem:[%s136 + $0x180] sm:$0xff] %v379
        %572 = vst [vmem:[%s136 + $0x188] sm:$0xff] %v380
        %573 = vst [vmem:[%s136 + $0x190] sm:$0xff] %v381
        %574 = vst [vmem:[%s136 + $0x198] sm:$0xff] %v382
        %575 = vst [vmem:[%s136 + $0x1a0] sm:$0xff] %v383
        %576 = vst [vmem:[%s136 + $0x1a8] sm:$0xff] %v384
        %577 = vst [vmem:[%s136 + $0x1b0] sm:$0xff] %v385
        %578 = vst [vmem:[%s136 + $0x1b8] sm:$0xff] %v386
        %579 = vst [vmem:[%s136 + $0x1c0] sm:$0xff] %v387
        %580 = vst [vmem:[%s136 + $0x1c8] sm:$0xff] %v388
        %581 = vst [vmem:[%s136 + $0x1d0] sm:$0xff] %v389
        %582 = vst [vmem:[%s136 + $0x1d8] sm:$0xff] %v390
        %583 = vst [vmem:[%s136 + $0x1e0] sm:$0xff] %v391
        %584 = vst [vmem:[%s136 + $0x1e8] sm:$0xff] %v392
        %585 = vst [vmem:[%s136 + $0x1f0] sm:$0xff] %v393
        %586 = vst [vmem:[%s136 + $0x1f8] sm:$0xff] %v394
        %587 = vst [vmem:[%s136 + $0x200] sm:$0xff] %v411
        %588 = vst [vmem:[%s136 + $0x208] sm:$0xff] %v412
        %589 = vst [vmem:[%s136 + $0x210] sm:$0xff] %v413
        %590 = vst [vmem:[%s136 + $0x218] sm:$0xff] %v414
        %591 = vst [vmem:[%s136 + $0x220] sm:$0xff] %v415
        %592 = vst [vmem:[%s136 + $0x228] sm:$0xff] %v416
        %593 = vst [vmem:[%s136 + $0x230] sm:$0xff] %v417
        %594 = vst [vmem:[%s136 + $0x238] sm:$0xff] %v418
        %595 = vst [vmem:[%s136 + $0x240] sm:$0xff] %v419
        %596 = vst [vmem:[%s136 + $0x248] sm:$0xff] %v420
        %597 = vst [vmem:[%s136 + $0x250] sm:$0xff] %v421
        %598 = vst [vmem:[%s136 + $0x258] sm:$0xff] %v422
        %599 = vst [vmem:[%s136 + $0x260] sm:$0xff] %v423
        %600 = vst [vmem:[%s136 + $0x268] sm:$0xff] %v424
        %601 = vst [vmem:[%s136 + $0x270] sm:$0xff] %v425
        %602 = vst [vmem:[%s136 + $0x278] sm:$0xff] %v426
        %603 = vst [vmem:[%s136 + $0x280] sm:$0xff] %v443
        %604 = vst [vmem:[%s136 + $0x288] sm:$0xff] %v444
        %605 = vst [vmem:[%s136 + $0x290] sm:$0xff] %v445
        %606 = vst [vmem:[%s136 + $0x298] sm:$0xff] %v446
        %607 = vst [vmem:[%s136 + $0x2a0] sm:$0xff] %v447
        %608 = vst [vmem:[%s136 + $0x2a8] sm:$0xff] %v448
        %609 = vst [vmem:[%s136 + $0x2b0] sm:$0xff] %v449
        %610 = vst [vmem:[%s136 + $0x2b8] sm:$0xff] %v450
        %611 = vst [vmem:[%s136 + $0x2c0] sm:$0xff] %v451
        %612 = vst [vmem:[%s136 + $0x2c8] sm:$0xff] %v452
        %613 = vst [vmem:[%s136 + $0x2d0] sm:$0xff] %v453
        %614 = vst [vmem:[%s136 + $0x2d8] sm:$0xff] %v454
        %615 = vst [vmem:[%s136 + $0x2e0] sm:$0xff] %v455
        %616 = vst [vmem:[%s136 + $0x2e8] sm:$0xff] %v456
        %617 = vst [vmem:[%s136 + $0x2f0] sm:$0xff] %v457
        %618 = vst [vmem:[%s136 + $0x2f8] sm:$0xff] %v458
        %619 = vst [vmem:[%s136 + $0x300] sm:$0xff] %v475
        %620 = vst [vmem:[%s136 + $0x308] sm:$0xff] %v476
        %621 = vst [vmem:[%s136 + $0x310] sm:$0xff] %v477
        %622 = vst [vmem:[%s136 + $0x318] sm:$0xff] %v478
        %623 = vst [vmem:[%s136 + $0x320] sm:$0xff] %v479
        %624 = vst [vmem:[%s136 + $0x328] sm:$0xff] %v480
        %625 = vst [vmem:[%s136 + $0x330] sm:$0xff] %v481
        %626 = vst [vmem:[%s136 + $0x338] sm:$0xff] %v482
        %627 = vst [vmem:[%s136 + $0x340] sm:$0xff] %v483
        %628 = vst [vmem:[%s136 + $0x348] sm:$0xff] %v484
        %629 = vst [vmem:[%s136 + $0x350] sm:$0xff] %v485
        %630 = vst [vmem:[%s136 + $0x358] sm:$0xff] %v486
        %631 = vst [vmem:[%s136 + $0x360] sm:$0xff] %v487
        %632 = vst [vmem:[%s136 + $0x368] sm:$0xff] %v488
        %633 = vst [vmem:[%s136 + $0x370] sm:$0xff] %v489
        %634 = vst [vmem:[%s136 + $0x378] sm:$0xff] %v490
        %635 = vst [vmem:[%s136 + $0x380] sm:$0xff] %v507
        %636 = vst [vmem:[%s136 + $0x388] sm:$0xff] %v508
        %637 = vst [vmem:[%s136 + $0x390] sm:$0xff] %v509
        %638 = vst [vmem:[%s136 + $0x398] sm:$0xff] %v510
        %639 = vst [vmem:[%s136 + $0x3a0] sm:$0xff] %v511
        %640 = vst [vmem:[%s136 + $0x3a8] sm:$0xff] %v512
        %641 = vst [vmem:[%s136 + $0x3b0] sm:$0xff] %v513
        %642 = vst [vmem:[%s136 + $0x3b8] sm:$0xff] %v514
        %643 = vst [vmem:[%s136 + $0x3c0] sm:$0xff] %v515
        %644 = vst [vmem:[%s136 + $0x3c8] sm:$0xff] %v516
        %645 = vst [vmem:[%s136 + $0x3d0] sm:$0xff] %v517
        %646 = vst [vmem:[%s136 + $0x3d8] sm:$0xff] %v518
        %647 = vst [vmem:[%s136 + $0x3e0] sm:$0xff] %v519
        %648 = vst [vmem:[%s136 + $0x3e8] sm:$0xff] %v520
        %649 = vst [vmem:[%s136 + $0x3f0] sm:$0xff] %v521
        %650 = vst [vmem:[%s136 + $0x3f8] sm:$0xff] %v522
        %s651 = sand.u32 %s52, 1
        %s652 = scalar_lea.sflag [#allocation4], %s651
        %s653 = sand.u32 %s52, 1
        %s654 = smul.addr %s653, 1024
        %s655 = scalar_lea.vmem [#allocation5], %s654
        // Predicated region
        $region29: #{tpu_custom_call.1} parent=23 // pred_check
          %p656 = pneg %p62
        $region30: #{tpu_custom_call.1} parent=23 // pred_check_branch
          %658 = sbr.rel (%p656) target = $region32
        $region31: #{tpu_custom_call.1} parent=23 // pred_region
          %s659 = smul.u32 128, %s18
          %661 = vsyncadd %s652, 0
          %s662 = smul.addr %s659, 8
          %s663 = scalar_lea.hbm %s1, %s662
          %s664 = sshll.u32 %s655, 4
          %s665 = int_to_ptr.vmem [resolvable:$true] %s664
          %s666 = sshll.u32 %s663, 4
          %s667 = int_to_ptr.hbm [resolvable:$true] %s666
          %672 = dma.vmem_to_hbm [thread:$0]  %s665, 16384, %s667, %s652, 128, 128, 8
        $region32: #{tpu_custom_call.1} parent=23 // pred_fallthru
          _
      $region24: #{tpu_custom_call.1} parent=5 // pred_fallthru
        _
      %p673 = scmp.le.s32.totalorder 2, %s13
      // Predicated region
      $region33: #{tpu_custom_call.1} parent=5 // pred_check
        %p674 = pneg %p673
      $region34: #{tpu_custom_call.1} parent=5 // pred_check_branch
        %676 = sbr.rel (%p674) target = $region36
      $region35: #{tpu_custom_call.1} parent=5 // pred_region
        %s677 = ssub.s32 %s13, 2
        // Predicated region
        $region37: #{tpu_custom_call.1} parent=35 // pred_check
          %p678 = pneg %p68
        $region38: #{tpu_custom_call.1} parent=35 // pred_check_branch
          %680 = sbr.rel (%p678) target = $region40
        $region39: #{tpu_custom_call.1} parent=35 // pred_region
          %s681 = sand.u32 %s53, 1
          %s682 = scalar_lea.sflag [#allocation4], %s681
          %s683 = sand.u32 %s53, 1
          %s684 = smul.addr %s683, 1024
          %s685 = scalar_lea.vmem [#allocation5], %s684
          %687 = dma.done %s682, 16384
        $region40: #{tpu_custom_call.1} parent=35 // pred_fallthru
          _
      $region36: #{tpu_custom_call.1} parent=5 // pred_fallthru
        _
    $region6: #{tpu_custom_call.1} parent=1 // loop_footer
      %s17 = sadd.s32 1, %s13
    $region7: #{tpu_custom_call.1} parent=1 // loop_footer_branch
      %12 = sbr.rel target = $region3
    $region8: #{tpu_custom_call.1} parent=1 // loop_exit
      _
    %688 = vsyncpa [#allocation3], 1
    %s689 = scalar_lea.sflag [#allocation3], 1
    %690 = vsyncpa %s689, 1
    %691 = vsyncpa [#allocation4], 1
    %s692 = scalar_lea.sflag [#allocation4], 1
    %693 = vsyncpa %s692, 1

</llo_original>
